<compile_context>
chip_gen: v5e
topology: v5e:2x2
jax: 0.10.0
libtpu: 0.0.40
codegen_flags: <defaults>
</compile_context>

<pallas_src>
import jax
import jax.numpy as jnp
from jax.experimental import pallas as pl
from jax.experimental.pallas import tpu as pltpu

EPS = 1e-5
_LANE = 128


def _round_up(x, m):
    return (x + m - 1) // m * m


def _vmem_cap_bytes():
    """Physical per-core VMEM with a conservative fallback (v7x = 64 MiB)."""
    try:
        cap = int(getattr(pltpu.get_tpu_info(), "vmem_capacity_bytes", 0))
        if cap > 0:
            return cap
    except Exception:
        pass
    return 64 << 20


# --------------------------------- fused ConvBlock ----------------------------------

def conv_block(x_ncl, params, *, tile_l=None):
    """ConvBlock forward (stride=1).  x_ncl: (N, Cin, L) f32 (PyTorch layout).
    params: {"w": (Cout, Cin, K), "b": (Cout,), "gamma": (Cout,), "beta": (Cout,)}.
    Returns (N, Cout, L) f32."""
    w, b, gamma, beta = params["w"], params["b"], params["gamma"], params["beta"]
    Cout, Cin, K = (int(d) for d in w.shape)
    N, cin_x, L = (int(d) for d in x_ncl.shape)
    assert cin_x == Cin
    assert K - 1 <= _LANE, "kernel taps must fit inside one 128-lane halo block"

    left = (K - 1) // 2                      # TF-SAME: left = (K-1)//2, right = K//2

    # --- time-axis tiling ------------------------------------------------------------
    # TILE_L is a multiple of 128 so the y/out tiles are lane-dense; 256 feeds the
    # 256-wide MXU on v6e/v7x.  TODO(synk): prefer 128 on v5e (128x128 MXU).
    if tile_l is None:
        tile_l = 256 if L >= 256 else _LANE
    TILE_L = int(tile_l)
    assert TILE_L % _LANE == 0
    Lt = int(pl.cdiv(L, TILE_L))             # grid extent along time
    L_round = Lt * TILE_L                    # rounded output length (tail masked)
    Lw = L_round + TILE_L                    # padded input length (halo always valid)
    halo_stride = TILE_L // _LANE

    # --- operand prep (no activation transposes; pad+cast fuse into one XLA copy) ----
    xp = jnp.pad(x_ncl.astype(jnp.bfloat16),
                 ((0, 0), (0, 0), (left, Lw - left - L)))            # (N, Cin, Lw)
    wk = jnp.transpose(w, (2, 0, 1)).astype(jnp.bfloat16)            # (K, Cout, Cin)
    b2 = b.astype(jnp.float32).reshape(Cout, 1)

    # ------------------------- phase 1: conv + BN statistics -------------------------
    def conv_stats_kernel(xb_ref, xh_ref, w_ref, b_ref, y_ref, s1_ref, s2_ref, xw_ref):
        n, t = pl.program_id(0), pl.program_id(1)

        @pl.when(jnp.logical_and(n == 0, t == 0))
        def _init():
            s1_ref[...] = jnp.zeros_like(s1_ref)
            s2_ref[...] = jnp.zeros_like(s2_ref)

        # channel-major SAME-padded window for this tile: [body | halo] on the lanes.
        xw_ref[:, :TILE_L] = xb_ref[0]
        xw_ref[:, TILE_L:] = xh_ref[0]

        # Conv = K accumulated MXU matmuls on lane-shifted window slices
        # (bf16 operands, f32 accumulation).  No im2col slab, no transposes.
        # TODO(synk): for deep Cin a single (K*Cin)-deep im2col matmul would raise
        #             MXU depth utilization at the cost of a K-wide VMEM slab.
        acc = jnp.zeros((Cout, TILE_L), jnp.float32)
        for k in range(K):
            acc = acc + jnp.dot(w_ref[k], xw_ref[:, k:k + TILE_L],
                                preferred_element_type=jnp.float32)
        yt = acc + b_ref[...]                      # conv bias (broadcast over lanes)

        # per-channel sum / sum^2 for training-mode BN (mask rounded-up tail cols).
        if L_round == L:
            ym = yt
        else:
            col = t * TILE_L + jax.lax.broadcasted_iota(jnp.int32, (1, TILE_L), 1)
            ym = jnp.where(col < L, yt, 0.0)
        s1_ref[...] += jnp.sum(ym, axis=1, keepdims=True)
        s2_ref[...] += jnp.sum(ym * ym, axis=1, keepdims=True)

        y_ref[0] = yt                              # lane-dense (Cout, TILE_L) store

    cap = _vmem_cap_bytes()
    need_a = (2 * Cin * TILE_L * 2 + 2 * Cin * _LANE * 2       # x body + halo (x2 buf)
              + 2 * K * Cout * Cin * 2                          # resident weights
              + Cin * (TILE_L + _LANE) * 2                      # bf16 window scratch
              + 2 * Cout * TILE_L * 4 + 16 * Cout * 4           # y tile + bias/stats
              + 6 * Cout * TILE_L * 4)                          # f32 temporaries
    vmem_a = int(min(0.8 * cap, max(32 << 20, 2 * need_a)))

    y_int, ssum, ssq = pl.pallas_call(
        conv_stats_kernel,
        out_shape=(jax.ShapeDtypeStruct((N, Cout, L_round), jnp.float32),
                   jax.ShapeDtypeStruct((Cout, 1), jnp.float32),
                   jax.ShapeDtypeStruct((Cout, 1), jnp.float32)),
        grid=(N, Lt),
        in_specs=[
            pl.BlockSpec((1, Cin, TILE_L), lambda n, t: (n, 0, t)),            # body
            pl.BlockSpec((1, Cin, _LANE),
                         lambda n, t: (n, 0, (t + 1) * halo_stride)),           # halo
            pl.BlockSpec((K, Cout, Cin), lambda n, t: (0, 0, 0)),               # weights
            pl.BlockSpec((Cout, 1), lambda n, t: (0, 0)),                       # bias
        ],
        out_specs=(
            pl.BlockSpec((1, Cout, TILE_L), lambda n, t: (n, 0, t)),            # y
            pl.BlockSpec((Cout, 1), lambda n, t: (0, 0)),                       # sum
            pl.BlockSpec((Cout, 1), lambda n, t: (0, 0)),                       # sum^2
        ),
        scratch_shapes=[pltpu.VMEM((Cin, TILE_L + _LANE), jnp.bfloat16)],
        compiler_params=pltpu.CompilerParams(
            # stat accumulators are revisited on every step -> sequential axes here.
            dimension_semantics=("arbitrary", "arbitrary"),
            vmem_limit_bytes=vmem_a),
    )(xp, xp, wk, b2)

    # fold the batch statistics into per-channel scale/shift (training-mode BN).
    cnt = float(N * L)
    mean = ssum / cnt                                      # (Cout, 1)
    var = jnp.maximum(ssq / cnt - mean * mean, 0.0)        # clamp one-pass variance
    inv = jax.lax.rsqrt(var + EPS)
    scale = gamma.astype(jnp.float32).reshape(Cout, 1) * inv
    shift = beta.astype(jnp.float32).reshape(Cout, 1) - mean * scale

    # ------------------------- phase 2: normalize + ReLU ----------------------------
    def bn_relu_kernel(y_ref, sc_ref, sh_ref, o_ref):
        o_ref[0] = jnp.maximum(y_ref[0] * sc_ref[...] + sh_ref[...], 0.0)

    need_b = 4 * Cout * TILE_L * 4 + 16 * Cout * 4
    vmem_b = int(min(0.8 * cap, max(32 << 20, 2 * need_b)))
    out = pl.pallas_call(
        bn_relu_kernel,
        out_shape=jax.ShapeDtypeStruct((N, Cout, L_round), jnp.float32),
        grid=(N, Lt),
        in_specs=[pl.BlockSpec((1, Cout, TILE_L), lambda n, t: (n, 0, t)),
                  pl.BlockSpec((Cout, 1), lambda n, t: (0, 0)),
                  pl.BlockSpec((Cout, 1), lambda n, t: (0, 0))],
        out_specs=pl.BlockSpec((1, Cout, TILE_L), lambda n, t: (n, 0, t)),
        compiler_params=pltpu.CompilerParams(
            dimension_semantics=("parallel", "parallel"),
            vmem_limit_bytes=vmem_b),
    )(y_int, scale, shift)

    return out if L_round == L else out[:, :, :L]


# --------------------------------- pure-JAX reference --------------------------------

def ref_conv_block(x_ncl, params):
    """Reference: Conv1dSamePadding (with bias) -> BatchNorm1d(train) -> ReLU."""
    w, b, gamma, beta = params["w"], params["b"], params["gamma"], params["beta"]
    K = w.shape[2]
    left, right = (K - 1) // 2, K // 2
    y = jax.lax.conv_general_dilated(
        x_ncl, w, window_strides=(1,), padding=[(left, right)],
        dimension_numbers=("NCH", "OIH", "NCH"))
    y = y + b.reshape(1, -1, 1)
    m = jnp.mean(y, axis=(0, 2), keepdims=True)
    v = jnp.mean((y - m) ** 2, axis=(0, 2), keepdims=True)
    y = (y - m) * jax.lax.rsqrt(v + EPS) * gamma.reshape(1, -1, 1) + beta.reshape(1, -1, 1)
    return jnp.maximum(y, 0.0)


# ---------------------------------------- main ---------------------------------------

if __name__ == "__main__":
    key = jax.random.PRNGKey(0)
    kx, kw, kb, kg, kbe = jax.random.split(key, 5)

    # ConvBlock(in_channels=4, out_channels=8, kernel_size=8, stride=1); x: (2, 4, 16)
    N, C_IN, C_OUT, K, L = 2, 4, 8, 8, 16
    x = jax.random.normal(kx, (N, C_IN, L), jnp.float32)
    params = {
        "w": 0.3 * jax.random.normal(kw, (C_OUT, C_IN, K), jnp.float32),
        "b": 0.1 * jax.random.normal(kb, (C_OUT,), jnp.float32),
        "gamma": 1.0 + 0.1 * jax.random.normal(kg, (C_OUT,), jnp.float32),
        "beta": 0.1 * jax.random.normal(kbe, (C_OUT,), jnp.float32),
    }
    out = jax.block_until_ready(conv_block(x, params))
    assert out.shape == (N, C_OUT, L)
    ref = jax.block_until_ready(ref_conv_block(x, params))
    assert jnp.allclose(out, ref, rtol=2e-2, atol=2e-2), "toy-shape mismatch vs reference"

    # second check: multi-tile grid (Lt=2), halo crossing a tile boundary, tail masking
    N2, CI2, CO2, K2, L2 = 2, 16, 32, 5, 384
    k2 = jax.random.split(key, 6)
    x2 = jax.random.normal(k2[0], (N2, CI2, L2), jnp.float32)
    params2 = {
        "w": 0.2 * jax.random.normal(k2[1], (CO2, CI2, K2), jnp.float32),
        "b": 0.1 * jax.random.normal(k2[2], (CO2,), jnp.float32),
        "gamma": 1.0 + 0.1 * jax.random.normal(k2[3], (CO2,), jnp.float32),
        "beta": 0.1 * jax.random.normal(k2[4], (CO2,), jnp.float32),
    }
    out2 = jax.block_until_ready(conv_block(x2, params2))
    assert out2.shape == (N2, CO2, L2)
    ref2 = jax.block_until_ready(ref_conv_block(x2, params2))
    assert jnp.allclose(out2, ref2, rtol=2e-2, atol=2e-2), "multi-tile mismatch vs reference"

    print("KERNEL_OK")
</pallas_src>

<mosaic_0001>
module attributes {stable_mosaic.version = 11 : i64} {
  func.func @conv_stats_kernel(%arg0: i32, %arg1: i32, %arg2: memref<1x4x128xbf16, #tpu.memory_space<vmem>>, %arg3: memref<1x4x128xbf16, #tpu.memory_space<vmem>>, %arg4: memref<8x8x4xbf16, #tpu.memory_space<vmem>>, %arg5: memref<8x1xf32, #tpu.memory_space<vmem>>, %arg6: memref<1x8x128xf32, #tpu.memory_space<vmem>>, %arg7: memref<8x1xf32, #tpu.memory_space<vmem>>, %arg8: memref<8x1xf32, #tpu.memory_space<vmem>>, %arg9: memref<4x256xbf16, #tpu.memory_space<vmem>>) attributes {dimension_semantics = [#tpu.dimension_semantics<arbitrary>, #tpu.dimension_semantics<arbitrary>], iteration_bounds = array<i64: 2, 1>, scalar_prefetch = 0 : i64, scratch_operands = 1 : i64, tpu.core_type = #tpu.core_type<tc>, window_params = [{transform_indices = @transform_0, window_bounds = array<i64: 1, 4, 128>}, {transform_indices = @transform_1, window_bounds = array<i64: 1, 4, 128>}, {pipeline_mode = #tpu.pipeline_mode<synchronous>, transform_indices = @transform_2, window_bounds = array<i64: 8, 8, 4>}, {pipeline_mode = #tpu.pipeline_mode<synchronous>, transform_indices = @transform_3, window_bounds = array<i64: 8, 1>}, {transform_indices = @transform_4, window_bounds = array<i64: 1, 8, 128>}, {pipeline_mode = #tpu.pipeline_mode<synchronous>, transform_indices = @transform_5, window_bounds = array<i64: 8, 1>}, {pipeline_mode = #tpu.pipeline_mode<synchronous>, transform_indices = @transform_6, window_bounds = array<i64: 8, 1>}]} {
    %c0_i32 = arith.constant 0 : i32
    %0 = arith.cmpi eq, %arg0, %c0_i32 : i32
    %c0_i32_0 = arith.constant 0 : i32
    %1 = arith.cmpi eq, %arg1, %c0_i32_0 : i32
    %2 = arith.andi %0, %1 : i1
    %3 = arith.extui %2 : i1 to i32
    %c0_i32_1 = arith.constant 0 : i32
    %4 = arith.cmpi ne, %3, %c0_i32_1 : i32
    scf.if %4 {
      %cst_67 = arith.constant 0.000000e+00 : f32
      %79 = vector.broadcast %cst_67 : f32 to vector<8x1xf32>
      %c0_68 = arith.constant 0 : index
      %c0_69 = arith.constant 0 : index
      %80 = vector.load %arg7[%c0_68, %c0_69] : memref<8x1xf32, #tpu.memory_space<vmem>>, vector<8x1xf32>
      tpu.vector_store %arg7[%c0_68, %c0_69], %79 {strides = array<i32>} : memref<8x1xf32, #tpu.memory_space<vmem>>, vector<8x1xf32>,
      %cst_70 = arith.constant 0.000000e+00 : f32
      %81 = vector.broadcast %cst_70 : f32 to vector<8x1xf32>
      %c0_71 = arith.constant 0 : index
      %c0_72 = arith.constant 0 : index
      %82 = vector.load %arg8[%c0_71, %c0_72] : memref<8x1xf32, #tpu.memory_space<vmem>>, vector<8x1xf32>
      tpu.vector_store %arg8[%c0_71, %c0_72], %81 {strides = array<i32>} : memref<8x1xf32, #tpu.memory_space<vmem>>, vector<8x1xf32>,
    } else {
    }
    %c0 = arith.constant 0 : index
    %c0_2 = arith.constant 0 : index
    %c0_3 = arith.constant 0 : index
    %5 = vector.load %arg2[%c0, %c0_2, %c0_3] : memref<1x4x128xbf16, #tpu.memory_space<vmem>>, vector<1x4x128xbf16>
    %6 = vector.shape_cast %5 : vector<1x4x128xbf16> to vector<4x128xbf16>
    %c0_4 = arith.constant 0 : index
    %c0_5 = arith.constant 0 : index
    %7 = vector.load %arg9[%c0_4, %c0_5] : memref<4x256xbf16, #tpu.memory_space<vmem>>, vector<4x128xbf16>
    tpu.vector_store %arg9[%c0_4, %c0_5], %6 {strides = array<i32>} : memref<4x256xbf16, #tpu.memory_space<vmem>>, vector<4x128xbf16>,
    %c0_6 = arith.constant 0 : index
    %c0_7 = arith.constant 0 : index
    %c0_8 = arith.constant 0 : index
    %8 = vector.load %arg3[%c0_6, %c0_7, %c0_8] : memref<1x4x128xbf16, #tpu.memory_space<vmem>>, vector<1x4x128xbf16>
    %9 = vector.shape_cast %8 : vector<1x4x128xbf16> to vector<4x128xbf16>
    %c0_9 = arith.constant 0 : index
    %c128 = arith.constant 128 : index
    %10 = vector.load %arg9[%c0_9, %c128] : memref<4x256xbf16, #tpu.memory_space<vmem>>, vector<4x128xbf16>
    tpu.vector_store %arg9[%c0_9, %c128], %9 {strides = array<i32>} : memref<4x256xbf16, #tpu.memory_space<vmem>>, vector<4x128xbf16>,
    %cst = arith.constant 0.000000e+00 : f32
    %11 = vector.broadcast %cst : f32 to vector<8x128xf32>
    %c0_10 = arith.constant 0 : index
    %c0_11 = arith.constant 0 : index
    %c0_12 = arith.constant 0 : index
    %12 = vector.load %arg4[%c0_10, %c0_11, %c0_12] : memref<8x8x4xbf16, #tpu.memory_space<vmem>>, vector<1x8x4xbf16>
    %13 = vector.shape_cast %12 : vector<1x8x4xbf16> to vector<8x4xbf16>
    %c0_13 = arith.constant 0 : index
    %c0_14 = arith.constant 0 : index
    %14 = vector.load %arg9[%c0_13, %c0_14] : memref<4x256xbf16, #tpu.memory_space<vmem>>, vector<4x128xbf16>
    %cst_15 = arith.constant dense<0.000000e+00> : vector<8x128xf32>
    %15 = tpu.matmul %13, %14, %cst_15 {dimension_numbers = #tpu.dot_dimension_numbers<[1], [0], [0], [1], [0, 0, 1, 1], [], []>} : vector<8x4xbf16>, vector<4x128xbf16>, vector<8x128xf32> -> vector<8x128xf32>
    %16 = arith.addf %11, %15 : vector<8x128xf32>
    %c1 = arith.constant 1 : index
    %c0_16 = arith.constant 0 : index
    %c0_17 = arith.constant 0 : index
    %17 = vector.load %arg4[%c1, %c0_16, %c0_17] : memref<8x8x4xbf16, #tpu.memory_space<vmem>>, vector<1x8x4xbf16>
    %18 = vector.shape_cast %17 : vector<1x8x4xbf16> to vector<8x4xbf16>
    %c0_18 = arith.constant 0 : index
    %c1_19 = arith.constant 1 : index
    %19 = vector.load %arg9[%c0_18, %c1_19] : memref<4x256xbf16, #tpu.memory_space<vmem>>, vector<4x128xbf16>
    %cst_20 = arith.constant dense<0.000000e+00> : vector<8x128xf32>
    %20 = tpu.matmul %18, %19, %cst_20 {dimension_numbers = #tpu.dot_dimension_numbers<[1], [0], [0], [1], [0, 0, 1, 1], [], []>} : vector<8x4xbf16>, vector<4x128xbf16>, vector<8x128xf32> -> vector<8x128xf32>
    %21 = arith.addf %16, %20 : vector<8x128xf32>
    %c2 = arith.constant 2 : index
    %c0_21 = arith.constant 0 : index
    %c0_22 = arith.constant 0 : index
    %22 = vector.load %arg4[%c2, %c0_21, %c0_22] : memref<8x8x4xbf16, #tpu.memory_space<vmem>>, vector<1x8x4xbf16>
    %23 = vector.shape_cast %22 : vector<1x8x4xbf16> to vector<8x4xbf16>
    %c0_23 = arith.constant 0 : index
    %c2_24 = arith.constant 2 : index
    %24 = vector.load %arg9[%c0_23, %c2_24] : memref<4x256xbf16, #tpu.memory_space<vmem>>, vector<4x128xbf16>
    %cst_25 = arith.constant dense<0.000000e+00> : vector<8x128xf32>
    %25 = tpu.matmul %23, %24, %cst_25 {dimension_numbers = #tpu.dot_dimension_numbers<[1], [0], [0], [1], [0, 0, 1, 1], [], []>} : vector<8x4xbf16>, vector<4x128xbf16>, vector<8x128xf32> -> vector<8x128xf32>
    %26 = arith.addf %21, %25 : vector<8x128xf32>
    %c3 = arith.constant 3 : index
    %c0_26 = arith.constant 0 : index
    %c0_27 = arith.constant 0 : index
    %27 = vector.load %arg4[%c3, %c0_26, %c0_27] : memref<8x8x4xbf16, #tpu.memory_space<vmem>>, vector<1x8x4xbf16>
    %28 = vector.shape_cast %27 : vector<1x8x4xbf16> to vector<8x4xbf16>
    %c0_28 = arith.constant 0 : index
    %c3_29 = arith.constant 3 : index
    %29 = vector.load %arg9[%c0_28, %c3_29] : memref<4x256xbf16, #tpu.memory_space<vmem>>, vector<4x128xbf16>
    %cst_30 = arith.constant dense<0.000000e+00> : vector<8x128xf32>
    %30 = tpu.matmul %28, %29, %cst_30 {dimension_numbers = #tpu.dot_dimension_numbers<[1], [0], [0], [1], [0, 0, 1, 1], [], []>} : vector<8x4xbf16>, vector<4x128xbf16>, vector<8x128xf32> -> vector<8x128xf32>
    %31 = arith.addf %26, %30 : vector<8x128xf32>
    %c4 = arith.constant 4 : index
    %c0_31 = arith.constant 0 : index
    %c0_32 = arith.constant 0 : index
    %32 = vector.load %arg4[%c4, %c0_31, %c0_32] : memref<8x8x4xbf16, #tpu.memory_space<vmem>>, vector<1x8x4xbf16>
    %33 = vector.shape_cast %32 : vector<1x8x4xbf16> to vector<8x4xbf16>
    %c0_33 = arith.constant 0 : index
    %c4_34 = arith.constant 4 : index
    %34 = vector.load %arg9[%c0_33, %c4_34] : memref<4x256xbf16, #tpu.memory_space<vmem>>, vector<4x128xbf16>
    %cst_35 = arith.constant dense<0.000000e+00> : vector<8x128xf32>
    %35 = tpu.matmul %33, %34, %cst_35 {dimension_numbers = #tpu.dot_dimension_numbers<[1], [0], [0], [1], [0, 0, 1, 1], [], []>} : vector<8x4xbf16>, vector<4x128xbf16>, vector<8x128xf32> -> vector<8x128xf32>
    %36 = arith.addf %31, %35 : vector<8x128xf32>
    %c5 = arith.constant 5 : index
    %c0_36 = arith.constant 0 : index
    %c0_37 = arith.constant 0 : index
    %37 = vector.load %arg4[%c5, %c0_36, %c0_37] : memref<8x8x4xbf16, #tpu.memory_space<vmem>>, vector<1x8x4xbf16>
    %38 = vector.shape_cast %37 : vector<1x8x4xbf16> to vector<8x4xbf16>
    %c0_38 = arith.constant 0 : index
    %c5_39 = arith.constant 5 : index
    %39 = vector.load %arg9[%c0_38, %c5_39] : memref<4x256xbf16, #tpu.memory_space<vmem>>, vector<4x128xbf16>
    %cst_40 = arith.constant dense<0.000000e+00> : vector<8x128xf32>
    %40 = tpu.matmul %38, %39, %cst_40 {dimension_numbers = #tpu.dot_dimension_numbers<[1], [0], [0], [1], [0, 0, 1, 1], [], []>} : vector<8x4xbf16>, vector<4x128xbf16>, vector<8x128xf32> -> vector<8x128xf32>
    %41 = arith.addf %36, %40 : vector<8x128xf32>
    %c6 = arith.constant 6 : index
    %c0_41 = arith.constant 0 : index
    %c0_42 = arith.constant 0 : index
    %42 = vector.load %arg4[%c6, %c0_41, %c0_42] : memref<8x8x4xbf16, #tpu.memory_space<vmem>>, vector<1x8x4xbf16>
    %43 = vector.shape_cast %42 : vector<1x8x4xbf16> to vector<8x4xbf16>
    %c0_43 = arith.constant 0 : index
    %c6_44 = arith.constant 6 : index
    %44 = vector.load %arg9[%c0_43, %c6_44] : memref<4x256xbf16, #tpu.memory_space<vmem>>, vector<4x128xbf16>
    %cst_45 = arith.constant dense<0.000000e+00> : vector<8x128xf32>
    %45 = tpu.matmul %43, %44, %cst_45 {dimension_numbers = #tpu.dot_dimension_numbers<[1], [0], [0], [1], [0, 0, 1, 1], [], []>} : vector<8x4xbf16>, vector<4x128xbf16>, vector<8x128xf32> -> vector<8x128xf32>
    %46 = arith.addf %41, %45 : vector<8x128xf32>
    %c7 = arith.constant 7 : index
    %c0_46 = arith.constant 0 : index
    %c0_47 = arith.constant 0 : index
    %47 = vector.load %arg4[%c7, %c0_46, %c0_47] : memref<8x8x4xbf16, #tpu.memory_space<vmem>>, vector<1x8x4xbf16>
    %48 = vector.shape_cast %47 : vector<1x8x4xbf16> to vector<8x4xbf16>
    %c0_48 = arith.constant 0 : index
    %c7_49 = arith.constant 7 : index
    %49 = vector.load %arg9[%c0_48, %c7_49] : memref<4x256xbf16, #tpu.memory_space<vmem>>, vector<4x128xbf16>
    %cst_50 = arith.constant dense<0.000000e+00> : vector<8x128xf32>
    %50 = tpu.matmul %48, %49, %cst_50 {dimension_numbers = #tpu.dot_dimension_numbers<[1], [0], [0], [1], [0, 0, 1, 1], [], []>} : vector<8x4xbf16>, vector<4x128xbf16>, vector<8x128xf32> -> vector<8x128xf32>
    %51 = arith.addf %46, %50 : vector<8x128xf32>
    %c0_51 = arith.constant 0 : index
    %c0_52 = arith.constant 0 : index
    %52 = vector.load %arg5[%c0_51, %c0_52] : memref<8x1xf32, #tpu.memory_space<vmem>>, vector<8x1xf32>
    %53 = vector.broadcast %52 : vector<8x1xf32> to vector<8x128xf32>
    %54 = arith.addf %51, %53 : vector<8x128xf32>
    %c128_i32 = arith.constant 128 : i32
    %55 = arith.muli %arg1, %c128_i32 : i32
    %56 = tpu.iota {dimensions = array<i32: 1>} : vector<1x128xi32>
    %57 = vector.broadcast %55 : i32 to vector<1x128xi32>
    %58 = arith.addi %57, %56 : vector<1x128xi32>
    %c16_i32 = arith.constant 16 : i32
    %59 = vector.broadcast %c16_i32 : i32 to vector<1x128xi32>
    %60 = arith.cmpi slt, %58, %59 : vector<1x128xi32>
    %cst_53 = arith.constant 0.000000e+00 : f32
    %61 = vector.shape_cast %60 : vector<1x128xi1> to vector<1x128xi1>
    %62 = vector.broadcast %61 : vector<1x128xi1> to vector<8x128xi1>
    %63 = vector.broadcast %cst_53 : f32 to vector<8x128xf32>
    %64 = arith.select %62, %54, %63 : vector<8x128xi1>, vector<8x128xf32>
    %c0_54 = arith.constant 0 : index
    %c0_55 = arith.constant 0 : index
    %65 = vector.load %arg7[%c0_54, %c0_55] : memref<8x1xf32, #tpu.memory_space<vmem>>, vector<8x1xf32>
    %cst_56 = arith.constant dense<0.000000e+00> : vector<8xf32>
    %66 = vector.multi_reduction <add>, %64, %cst_56 [1] : vector<8x128xf32> to vector<8xf32>
    %67 = vector.shape_cast %66 : vector<8xf32> to vector<8x1xf32>
    %68 = arith.addf %65, %67 : vector<8x1xf32>
    %c0_57 = arith.constant 0 : index
    %c0_58 = arith.constant 0 : index
    %69 = vector.load %arg7[%c0_57, %c0_58] : memref<8x1xf32, #tpu.memory_space<vmem>>, vector<8x1xf32>
    tpu.vector_store %arg7[%c0_57, %c0_58], %68 {strides = array<i32>} : memref<8x1xf32, #tpu.memory_space<vmem>>, vector<8x1xf32>,
    %c0_59 = arith.constant 0 : index
    %c0_60 = arith.constant 0 : index
    %70 = vector.load %arg8[%c0_59, %c0_60] : memref<8x1xf32, #tpu.memory_space<vmem>>, vector<8x1xf32>
    %71 = arith.mulf %64, %64 : vector<8x128xf32>
    %cst_61 = arith.constant dense<0.000000e+00> : vector<8xf32>
    %72 = vector.multi_reduction <add>, %71, %cst_61 [1] : vector<8x128xf32> to vector<8xf32>
    %73 = vector.shape_cast %72 : vector<8xf32> to vector<8x1xf32>
    %74 = arith.addf %70, %73 : vector<8x1xf32>
    %c0_62 = arith.constant 0 : index
    %c0_63 = arith.constant 0 : index
    %75 = vector.load %arg8[%c0_62, %c0_63] : memref<8x1xf32, #tpu.memory_space<vmem>>, vector<8x1xf32>
    tpu.vector_store %arg8[%c0_62, %c0_63], %74 {strides = array<i32>} : memref<8x1xf32, #tpu.memory_space<vmem>>, vector<8x1xf32>,
    %c0_64 = arith.constant 0 : index
    %c0_65 = arith.constant 0 : index
    %c0_66 = arith.constant 0 : index
    %76 = vector.load %arg6[%c0_64, %c0_65, %c0_66] : memref<1x8x128xf32, #tpu.memory_space<vmem>>, vector<1x8x128xf32>
    %77 = vector.shape_cast %76 : vector<1x8x128xf32> to vector<8x128xf32>
    %78 = vector.shape_cast %54 : vector<8x128xf32> to vector<1x8x128xf32>
    tpu.vector_store %arg6[%c0_64, %c0_65, %c0_66], %78 {strides = array<i32>} : memref<1x8x128xf32, #tpu.memory_space<vmem>>, vector<1x8x128xf32>,
    return
  }
  func.func @transform_0(%arg0: i32, %arg1: i32) -> (i32, i32, i32) {
    %c0_i32 = arith.constant 0 : i32
    %c0_i32_0 = arith.constant 0 : i32
    return %arg0, %c0_i32, %arg1 : i32, i32, i32
  }
  func.func @transform_1(%arg0: i32, %arg1: i32) -> (i32, i32, i32) {
    %c1_i32 = arith.constant 1 : i32
    %0 = arith.addi %arg1, %c1_i32 : i32
    %c1_i32_0 = arith.constant 1 : i32
    %1 = arith.muli %0, %c1_i32_0 : i32
    %c0_i32 = arith.constant 0 : i32
    %c0_i32_1 = arith.constant 0 : i32
    return %arg0, %c0_i32, %1 : i32, i32, i32
  }
  func.func @transform_2(%arg0: i32, %arg1: i32) -> (i32, i32, i32) {
    %c0_i32 = arith.constant 0 : i32
    %c0_i32_0 = arith.constant 0 : i32
    %c0_i32_1 = arith.constant 0 : i32
    %c0_i32_2 = arith.constant 0 : i32
    return %c0_i32, %c0_i32_0, %c0_i32_1 : i32, i32, i32
  }
  func.func @transform_3(%arg0: i32, %arg1: i32) -> (i32, i32) {
    %c0_i32 = arith.constant 0 : i32
    %c0_i32_0 = arith.constant 0 : i32
    %c0_i32_1 = arith.constant 0 : i32
    return %c0_i32, %c0_i32_0 : i32, i32
  }
  func.func @transform_4(%arg0: i32, %arg1: i32) -> (i32, i32, i32) {
    %c0_i32 = arith.constant 0 : i32
    %c0_i32_0 = arith.constant 0 : i32
    return %arg0, %c0_i32, %arg1 : i32, i32, i32
  }
  func.func @transform_5(%arg0: i32, %arg1: i32) -> (i32, i32) {
    %c0_i32 = arith.constant 0 : i32
    %c0_i32_0 = arith.constant 0 : i32
    %c0_i32_1 = arith.constant 0 : i32
    return %c0_i32, %c0_i32_0 : i32, i32
  }
  func.func @transform_6(%arg0: i32, %arg1: i32) -> (i32, i32) {
    %c0_i32 = arith.constant 0 : i32
    %c0_i32_0 = arith.constant 0 : i32
    %c0_i32_1 = arith.constant 0 : i32
    return %c0_i32, %c0_i32_0 : i32, i32
  }
}

</mosaic_0001>

<llo_original>
// kernel: tpu_custom_call.1
$region0: #{tpu_custom_call.1}
  #allocation0 [shape = 'u32[]', space=smem, size = 0x4, offset = 0x4, fixed_abs, tag = 'smem constant byte address 0x4 - core index']
  #allocation1 [shape = 'u32[72,128]{1,0:T(1,128)}', space=vmem, size = 0x9000, scoped, tag = 'internal scratch']
  #allocation2 [shape = 'bf16[4,256]{1,0:T(4,128)(2,1)}', space=vmem, size = 0x800, scoped, tag = 'scratch operand']
  %s0 = inlined_call_operand.vmem [shape: bf16[2,4,256], index: 0, kind: input, shape index: {}]
  %s1 = inlined_call_operand.vmem [shape: bf16[2,4,256], index: 1, kind: input, shape index: {}]
  %s2 = inlined_call_operand.vmem [shape: bf16[8,8,4], index: 2, kind: input, shape index: {}]
  %s3 = inlined_call_operand.vmem [shape: f32[8,1], index: 3, kind: input, shape index: {}]
  %s4 = inlined_call_operand.hbm [shape: f32[2,8,128], index: 4, kind: output, shape index: {0}]
  %s5 = inlined_call_operand.vmem [shape: f32[8,1], index: 5, kind: output, shape index: {1}]
  %s6 = inlined_call_operand.vmem [shape: f32[8,1], index: 6, kind: output, shape index: {2}]
  %7 = xla_tuple %s4, %s5, %s6
  %s8 = sld [smem:[#allocation0]]
  $region69: #{tpu_custom_call.1} parent=0
    _
  %s10 = ssub.s32 1, %s8
  %s11 = scalar_select 0, %s10, %s8
  $region1: #{tpu_custom_call.1} parent=0
    #allocation3 [shape = 'u8[8192]{0}', space=vmem, size = 0x2000, scoped, tag = 'output window, operand 0']
    #allocation4 [shape = 's32[2]{0}', space=sflag, size = 0x8, scoped, tag = 'scoped memory for tpu_custom_call.1']
    %12 = vsyncpa [#allocation4], 0
    %s13 = scalar_lea.sflag [#allocation4], 1
    %14 = vsyncpa %s13, 0
    loop: start=0, step=1, limit=4
    $region2: #{tpu_custom_call.1} parent=1 // loop_pre_header
      _
    $region3: #{tpu_custom_call.1} parent=1 // loop_header
      %s16 = sphi 0, %s20
      %p17 = scmp.ge.s32.totalorder %s16, 4
      %s23 = sphi 0, %s35
      %s24 = sphi 0, %s31
      %s25 = sphi 0, %s23
      %s26 = sphi 0, %s24
      %s27 = sphi 0, %s25
      %s28 = sphi 0, %s26
      %s40 = sphi 0, %s42
      %s43 = sphi 0, %s40
      %s44 = sphi 0, %s43
      %s60 = sphi 0, %s44
      %s70 = sphi 0, %s72
      %s73 = sphi 0, %s70
      %s74 = sphi 0, %s73
      %s90 = sphi 0, %s74
      %s94 = sphi 0, %s94
      %s96 = sphi 0, %s94
      %s97 = sphi 0, %s96
      %s111 = sphi 0, %s97
      %s115 = sphi 0, %s115
      %s117 = sphi 0, %s115
      %s118 = sphi 0, %s117
      %s132 = sphi 0, %s118
      %s140 = sphi 0, %s142
      %s143 = sphi 0, %s140
      %s144 = sphi 0, %s143
      %s160 = sphi 0, %s144
      %s164 = sphi 0, %s164
      %s166 = sphi 0, %s164
      %s167 = sphi 0, %s166
      %s181 = sphi 0, %s167
      %s185 = sphi 0, %s185
      %s187 = sphi 0, %s185
      %s188 = sphi 0, %s187
      %s202 = sphi 0, %s188
    $region4: #{tpu_custom_call.1} parent=1 // loop_header_branch
      %19 = sbr.rel (%p17) target = $region8
    $region5: #{tpu_custom_call.1} parent=1 // loop_body
      %s21 = ssub.s32 %s16, 1
      %s22 = ssub.s32 %s16, 2
      %s29 = sadd.s32 1, %s24
      %p30 = scmp.ge.s32.totalorder %s29, 1
      %s31 = scalar_select %p30, 0, %s29
      %s32 = sadd.s32 1, %s23
      %s33 = scalar_select %p30, %s32, %s23
      %p34 = scmp.ge.s32.totalorder %s33, 2
      %s35 = scalar_select %p34, 0, %s33
      %s36 = ssub.s32 %s23, %s35
      %s37 = ssub.s32 %s24, %s31
      %s38 = sor.u32 %s36, %s37
      %p39 = scmp.eq.s32.totalorder %s38, 0
      %s41 = sadd.s32 %s40, 1
      %s42 = scalar_select %p39, %s40, %s41
      %p45 = pneg %p39
      %p46 = scmp.eq.s32.totalorder %s16, 1
      %p47 = por %p45, %p46
      %p48 = scmp.ne.s32.totalorder %s40, %s43
      %p49 = scmp.eq.s32.totalorder %s16, 0
      %p50 = por %p48, %p49
      %p51 = scmp.ne.s32.totalorder %s40, %s43
      %p52 = scmp.eq.s32.totalorder %s21, 1
      %p53 = por %p51, %p52
      %p54 = scmp.ne.s32.totalorder %s43, %s44
      %p55 = scmp.eq.s32.totalorder %s21, 0
      %p56 = por %p54, %p55
      %p57 = scmp.ne.s32.totalorder %s43, %s44
      %p58 = scmp.eq.s32.totalorder %s22, 1
      %p59 = por %p57, %p58
      %p61 = scmp.ne.s32.totalorder %s44, %s60
      %p62 = scmp.eq.s32.totalorder %s22, 0
      %p63 = por %p61, %p62
      %s64 = sadd.s32 %s24, 1
      %s65 = sadd.s32 %s31, 1
      %s66 = ssub.s32 %s23, %s35
      %s67 = ssub.s32 %s64, %s65
      %s68 = sor.u32 %s66, %s67
      %p69 = scmp.eq.s32.totalorder %s68, 0
      %s71 = sadd.s32 %s70, 1
      %s72 = scalar_select %p69, %s70, %s71
      %p75 = pneg %p69
      %p76 = scmp.eq.s32.totalorder %s16, 1
      %p77 = por %p75, %p76
      %p78 = scmp.ne.s32.totalorder %s70, %s73
      %p79 = scmp.eq.s32.totalorder %s16, 0
      %p80 = por %p78, %p79
      %p81 = scmp.ne.s32.totalorder %s70, %s73
      %p82 = scmp.eq.s32.totalorder %s21, 1
      %p83 = por %p81, %p82
      %p84 = scmp.ne.s32.totalorder %s73, %s74
      %p85 = scmp.eq.s32.totalorder %s21, 0
      %p86 = por %p84, %p85
      %p87 = scmp.ne.s32.totalorder %s73, %s74
      %p88 = scmp.eq.s32.totalorder %s22, 1
      %p89 = por %p87, %p88
      %p91 = scmp.ne.s32.totalorder %s74, %s90
      %p92 = scmp.eq.s32.totalorder %s22, 0
      %p93 = por %p91, %p92
      %s95 = sadd.s32 %s94, 1
      %p98 = scmp.eq.s32.totalorder %s16, 1
      %p99 = scmp.ne.s32.totalorder %s94, %s96
      %p100 = scmp.eq.s32.totalorder %s16, 0
      %p101 = por %p99, %p100
      %p102 = scmp.ne.s32.totalorder %s94, %s96
      %p103 = scmp.eq.s32.totalorder %s21, 1
      %p104 = por %p102, %p103
      %p105 = scmp.ne.s32.totalorder %s96, %s97
      %p106 = scmp.eq.s32.totalorder %s21, 0
      %p107 = por %p105, %p106
      %p108 = scmp.ne.s32.totalorder %s96, %s97
      %p109 = scmp.eq.s32.totalorder %s22, 1
      %p110 = por %p108, %p109
      %p112 = scmp.ne.s32.totalorder %s97, %s111
      %p113 = scmp.eq.s32.totalorder %s22, 0
      %p114 = por %p112, %p113
      %s116 = sadd.s32 %s115, 1
      %p119 = scmp.eq.s32.totalorder %s16, 1
      %p120 = scmp.ne.s32.totalorder %s115, %s117
      %p121 = scmp.eq.s32.totalorder %s16, 0
      %p122 = por %p120, %p121
      %p123 = scmp.ne.s32.totalorder %s115, %s117
      %p124 = scmp.eq.s32.totalorder %s21, 1
      %p125 = por %p123, %p124
      %p126 = scmp.ne.s32.totalorder %s117, %s118
      %p127 = scmp.eq.s32.totalorder %s21, 0
      %p128 = por %p126, %p127
      %p129 = scmp.ne.s32.totalorder %s117, %s118
      %p130 = scmp.eq.s32.totalorder %s22, 1
      %p131 = por %p129, %p130
      %p133 = scmp.ne.s32.totalorder %s118, %s132
      %p134 = scmp.eq.s32.totalorder %s22, 0
      %p135 = por %p133, %p134
      %s136 = ssub.s32 %s23, %s35
      %s137 = ssub.s32 %s24, %s31
      %s138 = sor.u32 %s136, %s137
      %p139 = scmp.eq.s32.totalorder %s138, 0
      %s141 = sadd.s32 %s140, 1
      %s142 = scalar_select %p139, %s140, %s141
      %p145 = pneg %p139
      %p146 = scmp.eq.s32.totalorder %s16, 1
      %p147 = por %p145, %p146
      %p148 = scmp.ne.s32.totalorder %s140, %s143
      %p149 = scmp.eq.s32.totalorder %s16, 0
      %p150 = por %p148, %p149
      %p151 = scmp.ne.s32.totalorder %s140, %s143
      %p152 = scmp.eq.s32.totalorder %s21, 1
      %p153 = por %p151, %p152
      %p154 = scmp.ne.s32.totalorder %s143, %s144
      %p155 = scmp.eq.s32.totalorder %s21, 0
      %p156 = por %p154, %p155
      %p157 = scmp.ne.s32.totalorder %s143, %s144
      %p158 = scmp.eq.s32.totalorder %s22, 1
      %p159 = por %p157, %p158
      %p161 = scmp.ne.s32.totalorder %s144, %s160
      %p162 = scmp.eq.s32.totalorder %s22, 0
      %p163 = por %p161, %p162
      %s165 = sadd.s32 %s164, 1
      %p168 = scmp.eq.s32.totalorder %s16, 1
      %p169 = scmp.ne.s32.totalorder %s164, %s166
      %p170 = scmp.eq.s32.totalorder %s16, 0
      %p171 = por %p169, %p170
      %p172 = scmp.ne.s32.totalorder %s164, %s166
      %p173 = scmp.eq.s32.totalorder %s21, 1
      %p174 = por %p172, %p173
      %p175 = scmp.ne.s32.totalorder %s166, %s167
      %p176 = scmp.eq.s32.totalorder %s21, 0
      %p177 = por %p175, %p176
      %p178 = scmp.ne.s32.totalorder %s166, %s167
      %p179 = scmp.eq.s32.totalorder %s22, 1
      %p180 = por %p178, %p179
      %p182 = scmp.ne.s32.totalorder %s167, %s181
      %p183 = scmp.eq.s32.totalorder %s22, 0
      %p184 = por %p182, %p183
      %s186 = sadd.s32 %s185, 1
      %p189 = scmp.eq.s32.totalorder %s16, 1
      %p190 = scmp.ne.s32.totalorder %s185, %s187
      %p191 = scmp.eq.s32.totalorder %s16, 0
      %p192 = por %p190, %p191
      %p193 = scmp.ne.s32.totalorder %s185, %s187
      %p194 = scmp.eq.s32.totalorder %s21, 1
      %p195 = por %p193, %p194
      %p196 = scmp.ne.s32.totalorder %s187, %s188
      %p197 = scmp.eq.s32.totalorder %s21, 0
      %p198 = por %p196, %p197
      %p199 = scmp.ne.s32.totalorder %s187, %s188
      %p200 = scmp.eq.s32.totalorder %s22, 1
      %p201 = por %p199, %p200
      %p203 = scmp.ne.s32.totalorder %s188, %s202
      %p204 = scmp.eq.s32.totalorder %s22, 0
      %p205 = por %p203, %p204
      %p206 = scmp.le.s32.totalorder 1, %s16
      %p207 = scmp.lt.s32.totalorder %s16, 3
      %p208 = pnand %p206, %p207
      %p209 = pneg %p208
      // Predicated region
      $region9: #{tpu_custom_call.1} parent=5 // pred_check
        _
      $region10: #{tpu_custom_call.1} parent=5 // pred_check_branch
        %211 = sbr.rel (%p208) target = $region12
      $region11: #{tpu_custom_call.1} parent=5 // pred_region
        %s212 = ssub.s32 %s16, 1
        // Predicated region
        $region13: #{tpu_custom_call.1} parent=11 // pred_check
          %p213 = pneg %p107
        $region14: #{tpu_custom_call.1} parent=11 // pred_check_branch
          %215 = sbr.rel (%p213) target = $region16
        $region15: #{tpu_custom_call.1} parent=11 // pred_region
          _
        $region16: #{tpu_custom_call.1} parent=11 // pred_fallthru
          _
        // Predicated region
        $region17: #{tpu_custom_call.1} parent=11 // pred_check
          %p216 = pneg %p128
        $region18: #{tpu_custom_call.1} parent=11 // pred_check_branch
          %218 = sbr.rel (%p216) target = $region20
        $region19: #{tpu_custom_call.1} parent=11 // pred_region
          _
        $region20: #{tpu_custom_call.1} parent=11 // pred_fallthru
          _
      $region12: #{tpu_custom_call.1} parent=5 // pred_fallthru
        _
      %p219 = scmp.lt.s32.totalorder %s16, 2
      // Predicated region
      $region21: #{tpu_custom_call.1} parent=5 // pred_check
        %p220 = pneg %p219
      $region22: #{tpu_custom_call.1} parent=5 // pred_check_branch
        %222 = sbr.rel (%p220) target = $region24
      $region23: #{tpu_custom_call.1} parent=5 // pred_region
        // Predicated region
        $region25: #{tpu_custom_call.1} parent=23 // pred_check
          %p223 = pneg %p50
        $region26: #{tpu_custom_call.1} parent=23 // pred_check_branch
          %225 = sbr.rel (%p223) target = $region28
        $region27: #{tpu_custom_call.1} parent=23 // pred_region
          %p226 = scmp.lt.s32.totalorder %s23, 1
          %s227 = scalar_select %p226, %s23, 1
          %p228 = scmp.lt.s32.totalorder %s24, 1
          %s229 = scalar_select %p228, %s24, 1
          %s230 = smul.addr %s227, 2
          %s231 = sadd.s32 %s229, %s230
          %s232 = smul.addr %s231, 2
          %s233 = scalar_lea.vmem %s0, %s232
        $region28: #{tpu_custom_call.1} parent=23 // pred_fallthru
          _
        // Predicated region
        $region29: #{tpu_custom_call.1} parent=23 // pred_check
          %p234 = pneg %p80
        $region30: #{tpu_custom_call.1} parent=23 // pred_check_branch
          %236 = sbr.rel (%p234) target = $region32
        $region31: #{tpu_custom_call.1} parent=23 // pred_region
          %s237 = sadd.s32 %s24, 1
          %p238 = scmp.lt.s32.totalorder %s23, 1
          %s239 = scalar_select %p238, %s23, 1
          %p240 = scmp.lt.s32.totalorder %s237, 1
          %s241 = scalar_select %p240, %s237, 1
          %s242 = smul.addr %s239, 2
          %s243 = sadd.s32 %s241, %s242
          %s244 = smul.addr %s243, 2
          %s245 = scalar_lea.vmem %s1, %s244
          %s246 = sadd.s32 %s24, 1
        $region32: #{tpu_custom_call.1} parent=23 // pred_fallthru
          _
      $region24: #{tpu_custom_call.1} parent=5 // pred_fallthru
        _
      %p247 = scmp.le.s32.totalorder 1, %s16
      %p248 = scmp.lt.s32.totalorder %s16, 3
      %p249 = pnand %p247, %p248
      %p250 = pneg %p249
      // Predicated region
      $region33: #{tpu_custom_call.1} parent=5 // pred_check
        _
      $region34: #{tpu_custom_call.1} parent=5 // pred_check_branch
        %252 = sbr.rel (%p249) target = $region36
      $region35: #{tpu_custom_call.1} parent=5 // pred_region
        %s253 = ssub.s32 %s16, 1
        %p254 = scmp.lt.s32.totalorder %s25, 1
        %s255 = scalar_select %p254, %s25, 1
        %p256 = scmp.lt.s32.totalorder %s26, 1
        %s257 = scalar_select %p256, %s26, 1
        %s258 = smul.addr %s255, 2
        %s259 = sadd.s32 %s257, %s258
        %s260 = smul.addr %s259, 2
        %s261 = scalar_lea.vmem %s0, %s260
        %p262 = pneg %p56
        %p263 = pneg %p53
        %s264 = sadd.s32 %s26, 1
        %p265 = scmp.lt.s32.totalorder %s25, 1
        %s266 = scalar_select %p265, %s25, 1
        %p267 = scmp.lt.s32.totalorder %s264, 1
        %s268 = scalar_select %p267, %s264, 1
        %s269 = smul.addr %s266, 2
        %s270 = sadd.s32 %s268, %s269
        %s271 = smul.addr %s270, 2
        %s272 = scalar_lea.vmem %s1, %s271
        %p273 = pneg %p86
        %p274 = pneg %p83
        %p275 = pneg %p107
        %p276 = pneg %p104
        %p277 = pneg %p128
        %p278 = pneg %p125
        %p279 = pneg %p156
        %p280 = pneg %p153
        %s281 = sand.u32 %s143, 1
        %s282 = scalar_lea.sflag [#allocation4], %s281
        %s283 = sand.u32 %s143, 1
        %s284 = smul.addr %s283, 8
        %s285 = scalar_lea.vmem [#allocation3], %s284
        %p286 = pneg %p177
        %p287 = pneg %p174
        %p288 = pneg %p198
        %p289 = pneg %p195
        %p290 = scmp.lt.s32.totalorder %s25, 1
        %s291 = scalar_select %p290, %s25, 1
        %p292 = scmp.lt.s32.totalorder %s26, 1
        %s293 = scalar_select %p292, %s26, 1
        %s294 = smul.addr %s291, 2
        %s295 = sadd.s32 %s293, %s294
        %s296 = smul.addr %s295, 2
        %s297 = scalar_lea.vmem %s0, %s296
        %s298 = sadd.s32 %s26, 1
        %p299 = scmp.lt.s32.totalorder %s25, 1
        %s300 = scalar_select %p299, %s25, 1
        %p301 = scmp.lt.s32.totalorder %s298, 1
        %s302 = scalar_select %p301, %s298, 1
        %s303 = smul.addr %s300, 2
        %s304 = sadd.s32 %s302, %s303
        %s305 = smul.addr %s304, 2
        %s306 = scalar_lea.vmem %s1, %s305
        %s307 = sadd.s32 %s26, 1
        %p309 = scmp.eq.s32.totalorder %s25, 0
        %p310 = scmp.eq.s32.totalorder %s26, 0
        %p311 = pnand %p309, %p310
        %p312 = pneg %p311
        // Predicated region
        $region37: #{tpu_custom_call.1} parent=35 // pred_check
          _
        $region38: #{tpu_custom_call.1} parent=35 // pred_check_branch
          %314 = sbr.rel (%p311) target = $region40
        $region39: #{tpu_custom_call.1} parent=35 // pred_region
          %vm315 = vcmask 7168
          %316 = vst.msk [vmem:[%s5] sm:$0xff] %vm315, 0.0
          %317 = vst.msk [vmem:[%s6] sm:$0xff] %vm315, 0.0
        $region40: #{tpu_custom_call.1} parent=35 // pred_fallthru
          _
        %v318 = vld [vmem:[%s297] sm:$0x3]
        %319 = vst [vmem:[#allocation2] sm:$0x3] %v318
        %v320 = vld [vmem:[%s306] sm:$0x3]
        %321 = vst [vmem:[#allocation2 + $0x2] sm:$0x3] %v320
        %v322 = vld [vmem:[%s2] sm:$0xf]
        %v323 = vld [vmem:[#allocation2] sm:$0x3]
        %s324 = scalar_lea.vmem %s2, 4
        %v325 = vld [vmem:[%s324] sm:$0xf]
        %v326 = vld [vmem:[#allocation2] sm:$0xf]
        %328 = vst [vmem:[#allocation1] ss:$4 sm:$0xff] %v326
        %v329 = vld.sshfl [vmem:[#allocation1] sm:$0xff pattern:$0x73625140]
        %v331 = vld.sshfl [vmem:[#allocation1 + $0x8] sm:$0xff pattern:$0x73625140]
        %333 = vrot.lane.b32.xlu0 %v329, 127
        %v334 = vpop.permute.xlu0 %333
        %335 = vrot.lane.b32.xlu0 %v331, 127
        %v336 = vpop.permute.xlu0 %335
        %vm337 = vcmask 1039360
        %v338 = vsel %vm337, %v334, %v336
        %vm339 = vcmask 31744
        %v341 = vsel %vm339, %v325, 0
        %vm343 = vcmask 1041408
        %v345 = vsel %vm343, %v338, 0
        %347 = vmatpush.bf16.msra.mxu0 0
        %348 = vmatpush.bf16.msra.mxu0 0
        %349 = vmatpush.bf16.msra.mxu0 0
        %350 = vmatpush.bf16.msra.mxu0 0
        %351 = vmatpush.bf16.msra.mxu0 0
        %352 = vmatpush.bf16.msra.mxu0 0
        %353 = vmatpush.bf16.msra.mxu0 0
        %354 = vmatpush.bf16.msra.mxu0 %v345
        %355 = vmatmul.bf16.gmra.mxu0 %v341
        %v356 = vpop.f32.mrf.mxu0
        %v357 = vadd.f32 0.0, %v356
        %v358 = vpop.f32.mrf.mxu0
        %359 = vdwg.mxu0
        %v361 = vsel %vm339, %v322, 0
        %v364 = vsel %vm343, %v323, 0
        %366 = vmatpush.bf16.msra.mxu0 0
        %367 = vmatpush.bf16.msra.mxu0 0
        %368 = vmatpush.bf16.msra.mxu0 0
        %369 = vmatpush.bf16.msra.mxu0 0
        %370 = vmatpush.bf16.msra.mxu0 0
        %371 = vmatpush.bf16.msra.mxu0 0
        %372 = vmatpush.bf16.msra.mxu0 0
        %373 = vmatpush.bf16.msra.mxu0 %v364
        %374 = vmatmul.bf16.gmra.mxu0 %v361
        %v375 = vpop.f32.mrf.mxu0
        %v376 = vadd.f32 %v357, %v375
        %v377 = vpop.f32.mrf.mxu0
        %378 = vdwg.mxu0
        %s379 = scalar_lea.vmem %s2, 8
        %v380 = vld [vmem:[%s379] sm:$0xf]
        %v381 = vld [vmem:[#allocation2] sm:$0xf]
        %383 = vst [vmem:[#allocation1] ss:$4 sm:$0xff] %v381
        %v384 = vld.sshfl [vmem:[#allocation1] sm:$0xff pattern:$0x73625140]
        %v386 = vld.sshfl [vmem:[#allocation1 + $0x8] sm:$0xff pattern:$0x73625140]
        %388 = vrot.lane.b32.xlu0 %v384, 126
        %v389 = vpop.permute.xlu0 %388
        %390 = vrot.lane.b32.xlu0 %v386, 126
        %v391 = vpop.permute.xlu0 %390
        %vm392 = vcmask 1031168
        %v393 = vsel %vm392, %v389, %v391
        %v395 = vsel %vm339, %v380, 0
        %v398 = vsel %vm343, %v393, 0
        %400 = vmatpush.bf16.msra.mxu0 0
        %401 = vmatpush.bf16.msra.mxu0 0
        %402 = vmatpush.bf16.msra.mxu0 0
        %403 = vmatpush.bf16.msra.mxu0 0
        %404 = vmatpush.bf16.msra.mxu0 0
        %405 = vmatpush.bf16.msra.mxu0 0
        %406 = vmatpush.bf16.msra.mxu0 0
        %407 = vmatpush.bf16.msra.mxu0 %v398
        %408 = vmatmul.bf16.gmra.mxu0 %v395
        %v409 = vpop.f32.mrf.mxu0
        %v410 = vadd.f32 0.0, %v409
        %v411 = vpop.f32.mrf.mxu0
        %412 = vdwg.mxu0
        %v413 = vadd.f32 %v376, %v410
        %s414 = scalar_lea.vmem %s2, 12
        %v415 = vld [vmem:[%s414] sm:$0xf]
        %v416 = vld [vmem:[#allocation2] sm:$0xf]
        %418 = vst [vmem:[#allocation1] ss:$4 sm:$0xff] %v416
        %v419 = vld.sshfl [vmem:[#allocation1] sm:$0xff pattern:$0x73625140]
        %v421 = vld.sshfl [vmem:[#allocation1 + $0x8] sm:$0xff pattern:$0x73625140]
        %423 = vrot.lane.b32.xlu0 %v419, 125
        %v424 = vpop.permute.xlu0 %423
        %425 = vrot.lane.b32.xlu0 %v421, 125
        %v426 = vpop.permute.xlu0 %425
        %vm427 = vcmask 1022976
        %v428 = vsel %vm427, %v424, %v426
        %v430 = vsel %vm339, %v415, 0
        %v433 = vsel %vm343, %v428, 0
        %435 = vmatpush.bf16.msra.mxu0 0
        %436 = vmatpush.bf16.msra.mxu0 0
        %437 = vmatpush.bf16.msra.mxu0 0
        %438 = vmatpush.bf16.msra.mxu0 0
        %439 = vmatpush.bf16.msra.mxu0 0
        %440 = vmatpush.bf16.msra.mxu0 0
        %441 = vmatpush.bf16.msra.mxu0 0
        %442 = vmatpush.bf16.msra.mxu0 %v433
        %443 = vmatmul.bf16.gmra.mxu0 %v430
        %v444 = vpop.f32.mrf.mxu0
        %v445 = vadd.f32 0.0, %v444
        %v446 = vpop.f32.mrf.mxu0
        %447 = vdwg.mxu0
        %v448 = vadd.f32 %v413, %v445
        %s449 = scalar_lea.vmem %s2, 16
        %v450 = vld [vmem:[%s449] sm:$0xf]
        %v451 = vld [vmem:[#allocation2] sm:$0xf]
        %453 = vst [vmem:[#allocation1] ss:$4 sm:$0xff] %v451
        %v454 = vld.sshfl [vmem:[#allocation1] sm:$0xff pattern:$0x73625140]
        %v456 = vld.sshfl [vmem:[#allocation1 + $0x8] sm:$0xff pattern:$0x73625140]
        %458 = vrot.lane.b32.xlu0 %v454, 124
        %v459 = vpop.permute.xlu0 %458
        %460 = vrot.lane.b32.xlu0 %v456, 124
        %v461 = vpop.permute.xlu0 %460
        %vm462 = vcmask 1014784
        %v463 = vsel %vm462, %v459, %v461
        %v465 = vsel %vm339, %v450, 0
        %v468 = vsel %vm343, %v463, 0
        %470 = vmatpush.bf16.msra.mxu0 0
        %471 = vmatpush.bf16.msra.mxu0 0
        %472 = vmatpush.bf16.msra.mxu0 0
        %473 = vmatpush.bf16.msra.mxu0 0
        %474 = vmatpush.bf16.msra.mxu0 0
        %475 = vmatpush.bf16.msra.mxu0 0
        %476 = vmatpush.bf16.msra.mxu0 0
        %477 = vmatpush.bf16.msra.mxu0 %v468
        %478 = vmatmul.bf16.gmra.mxu0 %v465
        %v479 = vpop.f32.mrf.mxu0
        %v480 = vadd.f32 0.0, %v479
        %v481 = vpop.f32.mrf.mxu0
        %482 = vdwg.mxu0
        %v483 = vadd.f32 %v448, %v480
        %s484 = scalar_lea.vmem %s2, 20
        %v485 = vld [vmem:[%s484] sm:$0xf]
        %v486 = vld [vmem:[#allocation2] sm:$0xf]
        %488 = vst [vmem:[#allocation1] ss:$4 sm:$0xff] %v486
        %v489 = vld.sshfl [vmem:[#allocation1] sm:$0xff pattern:$0x73625140]
        %v491 = vld.sshfl [vmem:[#allocation1 + $0x8] sm:$0xff pattern:$0x73625140]
        %493 = vrot.lane.b32.xlu0 %v489, 123
        %v494 = vpop.permute.xlu0 %493
        %495 = vrot.lane.b32.xlu0 %v491, 123
        %v496 = vpop.permute.xlu0 %495
        %vm497 = vcmask 1006592
        %v498 = vsel %vm497, %v494, %v496
        %v500 = vsel %vm339, %v485, 0
        %v503 = vsel %vm343, %v498, 0
        %505 = vmatpush.bf16.msra.mxu0 0
        %506 = vmatpush.bf16.msra.mxu0 0
        %507 = vmatpush.bf16.msra.mxu0 0
        %508 = vmatpush.bf16.msra.mxu0 0
        %509 = vmatpush.bf16.msra.mxu0 0
        %510 = vmatpush.bf16.msra.mxu0 0
        %511 = vmatpush.bf16.msra.mxu0 0
        %512 = vmatpush.bf16.msra.mxu0 %v503
        %513 = vmatmul.bf16.gmra.mxu0 %v500
        %v514 = vpop.f32.mrf.mxu0
        %v515 = vadd.f32 0.0, %v514
        %v516 = vpop.f32.mrf.mxu0
        %517 = vdwg.mxu0
        %v518 = vadd.f32 %v483, %v515
        %s519 = scalar_lea.vmem %s2, 24
        %v520 = vld [vmem:[%s519] sm:$0xf]
        %v521 = vld [vmem:[#allocation2] sm:$0xf]
        %523 = vst [vmem:[#allocation1] ss:$4 sm:$0xff] %v521
        %v524 = vld.sshfl [vmem:[#allocation1] sm:$0xff pattern:$0x73625140]
        %v526 = vld.sshfl [vmem:[#allocation1 + $0x8] sm:$0xff pattern:$0x73625140]
        %528 = vrot.lane.b32.xlu0 %v524, 122
        %v529 = vpop.permute.xlu0 %528
        %530 = vrot.lane.b32.xlu0 %v526, 122
        %v531 = vpop.permute.xlu0 %530
        %vm532 = vcmask 998400
        %v533 = vsel %vm532, %v529, %v531
        %v535 = vsel %vm339, %v520, 0
        %v538 = vsel %vm343, %v533, 0
        %540 = vmatpush.bf16.msra.mxu0 0
        %541 = vmatpush.bf16.msra.mxu0 0
        %542 = vmatpush.bf16.msra.mxu0 0
        %543 = vmatpush.bf16.msra.mxu0 0
        %544 = vmatpush.bf16.msra.mxu0 0
        %545 = vmatpush.bf16.msra.mxu0 0
        %546 = vmatpush.bf16.msra.mxu0 0
        %547 = vmatpush.bf16.msra.mxu0 %v538
        %548 = vmatmul.bf16.gmra.mxu0 %v535
        %v549 = vpop.f32.mrf.mxu0
        %v550 = vadd.f32 0.0, %v549
        %v551 = vpop.f32.mrf.mxu0
        %552 = vdwg.mxu0
        %v553 = vadd.f32 %v518, %v550
        %s554 = scalar_lea.vmem %s2, 28
        %v555 = vld [vmem:[%s554] sm:$0xf]
        %v556 = vld [vmem:[#allocation2] sm:$0xf]
        %558 = vst [vmem:[#allocation1] ss:$4 sm:$0xff] %v556
        %v559 = vld.sshfl [vmem:[#allocation1] sm:$0xff pattern:$0x73625140]
        %v561 = vld.sshfl [vmem:[#allocation1 + $0x8] sm:$0xff pattern:$0x73625140]
        %563 = vrot.lane.b32.xlu0 %v559, 121
        %v564 = vpop.permute.xlu0 %563
        %565 = vrot.lane.b32.xlu0 %v561, 121
        %v566 = vpop.permute.xlu0 %565
        %vm567 = vcmask 990208
        %v568 = vsel %vm567, %v564, %v566
        %v570 = vsel %vm339, %v555, 0
        %v573 = vsel %vm343, %v568, 0
        %575 = vmatpush.bf16.msra.mxu0 0
        %576 = vmatpush.bf16.msra.mxu0 0
        %577 = vmatpush.bf16.msra.mxu0 0
        %578 = vmatpush.bf16.msra.mxu0 0
        %579 = vmatpush.bf16.msra.mxu0 0
        %580 = vmatpush.bf16.msra.mxu0 0
        %581 = vmatpush.bf16.msra.mxu0 0
        %582 = vmatpush.bf16.msra.mxu0 %v573
        %583 = vmatmul.bf16.gmra.mxu0 %v570
        %v584 = vpop.f32.mrf.mxu0
        %v585 = vadd.f32 0.0, %v584
        %v586 = vpop.f32.mrf.mxu0
        %587 = vdwg.mxu0
        %v588 = vadd.f32 %v553, %v585
        %v589 = vld [vmem:[%s3] sm:$0xff]
        %591 = vset.pattern.permute.xlu0 0
        %592 = vperm.xlu0 %591, %v589
        %v593 = vpop.permute.xlu0 %592
        %v595 = vadd.f32 %v588, %v593
        %s596 = smul.u32 %s26, 128
        %v597 = vlaneseq
        %v598 = vand.u32 %v597, 127
        %v599 = vstv %s596
        %v600 = vadd.s32 %v599, %v598
        %vm601 = vcmp.lt.s32.totalorder %v600, 16
        %v602 = vsel %vm601, 1, 0
        %vm603 = vcmp.eq.s32.totalorder %v602, 1
        %v604 = vsel %vm603, %v595, 0.0
        %v605 = vld [vmem:[%s5] sm:$0xff]
        %606 = vadd.xlane.f32.xlu0 %v604
        %v607 = vpop.xlane.xlu0 %606
        %v608 = vadd.f32 %v605, %v607
        %vm609 = vcmask 7168
        %610 = vst.msk [vmem:[%s5] sm:$0xff] %vm609, %v608
        %v611 = vld [vmem:[%s6] sm:$0xff]
        %v612 = vmul.f32 %v604, %v604
        %613 = vadd.xlane.f32.xlu0 %v612
        %v614 = vpop.xlane.xlu0 %613
        %v615 = vadd.f32 %v611, %v614
        %616 = vst.msk [vmem:[%s6] sm:$0xff] %vm609, %v615
        %617 = vst [vmem:[%s285] sm:$0xff] %v595
        %s618 = sand.u32 %s143, 1
        %s619 = scalar_lea.sflag [#allocation4], %s618
        %s620 = sand.u32 %s143, 1
        %s621 = smul.addr %s620, 8
        %s622 = scalar_lea.vmem [#allocation3], %s621
        // Predicated region
        $region41: #{tpu_custom_call.1} parent=35 // pred_check
          %p623 = pneg %p153
        $region42: #{tpu_custom_call.1} parent=35 // pred_check_branch
          %625 = sbr.rel (%p623) target = $region44
        $region43: #{tpu_custom_call.1} parent=35 // pred_region
          %627 = vsyncadd %s619, 0
          %s628 = sadd.s32 %s26, %s25
          %s629 = smul.addr %s628, 8
          %s630 = scalar_lea.hbm %s4, %s629
          %s632 = sshll.u32 %s622, 4
          %s633 = int_to_ptr.vmem [resolvable:$true] %s632
          %s634 = sshll.u32 %s630, 4
          %s635 = int_to_ptr.hbm [resolvable:$true] %s634
          %637 = dma.vmem_to_hbm [thread:$0]  %s633, 128, %s635, %s619
        $region44: #{tpu_custom_call.1} parent=35 // pred_fallthru
          _
        // Predicated region
        $region45: #{tpu_custom_call.1} parent=35 // pred_check
          %p638 = pneg %p174
        $region46: #{tpu_custom_call.1} parent=35 // pred_check_branch
          %640 = sbr.rel (%p638) target = $region48
        $region47: #{tpu_custom_call.1} parent=35 // pred_region
          _
        $region48: #{tpu_custom_call.1} parent=35 // pred_fallthru
          _
        // Predicated region
        $region49: #{tpu_custom_call.1} parent=35 // pred_check
          %p641 = pneg %p195
        $region50: #{tpu_custom_call.1} parent=35 // pred_check_branch
          %643 = sbr.rel (%p641) target = $region52
        $region51: #{tpu_custom_call.1} parent=35 // pred_region
          _
        $region52: #{tpu_custom_call.1} parent=35 // pred_fallthru
          _
        // Predicated region
        $region53: #{tpu_custom_call.1} parent=35 // pred_check
          %p644 = pneg %p174
        $region54: #{tpu_custom_call.1} parent=35 // pred_check_branch
          %646 = sbr.rel (%p644) target = $region56
        $region55: #{tpu_custom_call.1} parent=35 // pred_region
          _
        $region56: #{tpu_custom_call.1} parent=35 // pred_fallthru
          _
        // Predicated region
        $region57: #{tpu_custom_call.1} parent=35 // pred_check
          %p647 = pneg %p195
        $region58: #{tpu_custom_call.1} parent=35 // pred_check_branch
          %649 = sbr.rel (%p647) target = $region60
        $region59: #{tpu_custom_call.1} parent=35 // pred_region
          _
        $region60: #{tpu_custom_call.1} parent=35 // pred_fallthru
          _
      $region36: #{tpu_custom_call.1} parent=5 // pred_fallthru
        _
      %p650 = scmp.le.s32.totalorder 2, %s16
      // Predicated region
      $region61: #{tpu_custom_call.1} parent=5 // pred_check
        %p651 = pneg %p650
      $region62: #{tpu_custom_call.1} parent=5 // pred_check_branch
        %653 = sbr.rel (%p651) target = $region64
      $region63: #{tpu_custom_call.1} parent=5 // pred_region
        %s654 = ssub.s32 %s16, 2
        // Predicated region
        $region65: #{tpu_custom_call.1} parent=63 // pred_check
          %p655 = pneg %p159
        $region66: #{tpu_custom_call.1} parent=63 // pred_check_branch
          %657 = sbr.rel (%p655) target = $region68
        $region67: #{tpu_custom_call.1} parent=63 // pred_region
          %s658 = sand.u32 %s144, 1
          %s659 = scalar_lea.sflag [#allocation4], %s658
          %s660 = sand.u32 %s144, 1
          %s661 = smul.addr %s660, 8
          %s662 = scalar_lea.vmem [#allocation3], %s661
          %664 = dma.done %s659, 128
        $region68: #{tpu_custom_call.1} parent=63 // pred_fallthru
          _
      $region64: #{tpu_custom_call.1} parent=5 // pred_fallthru
        _
    $region6: #{tpu_custom_call.1} parent=1 // loop_footer
      %s20 = sadd.s32 1, %s16
    $region7: #{tpu_custom_call.1} parent=1 // loop_footer_branch
      %15 = sbr.rel target = $region3
    $region8: #{tpu_custom_call.1} parent=1 // loop_exit
      _
    %665 = vsyncpa [#allocation4], 1
    %s666 = scalar_lea.sflag [#allocation4], 1
    %667 = vsyncpa %s666, 1

</llo_original>
